<compile_context>
chip_gen: v5e
topology: v5e:2x2
jax: 0.10.0
libtpu: 0.0.40
codegen_flags: <defaults>
</compile_context>

<pallas_src>
import functools

import jax
import jax.numpy as jnp
from jax.experimental import pallas as pl
from jax.experimental.pallas import tpu as pltpu


# ----------------------------------------------------------------------------
# Host-side (plain JAX, f32) construction of the small constant matrices.
# ----------------------------------------------------------------------------
def _bilinear_matrix(old, new):
    """(new, old) f32 interpolation matrix matching
    F.interpolate(mode='bilinear', align_corners=False) along one axis."""
    scale = old / new
    i = jnp.arange(new, dtype=jnp.float32)
    src = jnp.maximum((i + 0.5) * scale - 0.5, 0.0)   # PyTorch clamps negatives
    x0f = jnp.floor(src)
    w1 = src - x0f
    w0 = 1.0 - w1
    x0 = jnp.clip(x0f.astype(jnp.int32), 0, old - 1)
    x1 = jnp.clip(x0 + 1, 0, old - 1)
    rows = jnp.arange(new)
    m = jnp.zeros((new, old), jnp.float32)
    m = m.at[rows, x0].add(w0)
    m = m.at[rows, x1].add(w1)
    return m


def _conv_matrices(weight_oihw, hc, wc):
    """3x3 / stride 1 / pad 1 conv on a (hc, wc*Cin) slab as pure matmuls.

    Returns
      S: (3, hc, hc)           row-shift matrices (zero padding built in)
      C: (3, wc*Cin, wc*Cout)  banded column-shift + channel-mix matrices
    such that  conv(x)_slab = sum_dy (S[dy] @ x_slab) @ C[dy]  (+ bias).
    """
    cout, cin = weight_oihw.shape[:2]
    # wt[dy, dx, ci, co] = weight[co, ci, dy, dx]
    wt = jnp.transpose(weight_oihw, (2, 3, 1, 0)).astype(jnp.float32)
    s = jnp.stack([jnp.eye(hc, k=dy - 1, dtype=jnp.float32) for dy in range(3)])
    bands = []
    for dy in range(3):
        c = jnp.zeros((wc * cin, wc * cout), jnp.float32)
        for dx in range(3):
            e = jnp.eye(wc, k=1 - dx, dtype=jnp.float32)   # e[w+dx-1, w] = 1
            c = c + jnp.kron(e, wt[dy, dx])
        bands.append(c)
    return s, jnp.stack(bands)


# ----------------------------------------------------------------------------
# Fused Pallas kernel: 3x3 conv + bilinear resize, one batch element per step.
# ----------------------------------------------------------------------------
def _fused_kernel(x_ref, s_ref, c_ref, b_ref, wh_ref, wwx_ref, o_ref, *,
                  conv_first):
    # x_ref  : (1, H, W*Cin)           input slab
    # s_ref  : (3, Hc, Hc)             conv row-shift matrices
    # c_ref  : (3, Wc*Cin, Wc*Cout)    conv banded channel-mix matrices
    # b_ref  : (1, Wc*Cout)            bias, tiled across width
    # wh_ref : (newH, H)               vertical interpolation matrix
    # wwx_ref: (W*Cr, newW*Cr)         horizontal interp, kron with I_Cr
    # o_ref  : (1, Hout, Wout*Cout)    output slab
    f32 = jnp.float32

    def conv3x3(u):
        acc = None
        for dy in range(3):
            v = u if dy == 1 else jnp.dot(s_ref[dy], u,
                                          preferred_element_type=f32)
            t = jnp.dot(v, c_ref[dy], preferred_element_type=f32)
            acc = t if acc is None else acc + t
        return acc + b_ref[...]          # (1, Wc*Cout) broadcasts over rows

    def resize(u):
        t = jnp.dot(wh_ref[...], u, preferred_element_type=f32)
        return jnp.dot(t, wwx_ref[...], preferred_element_type=f32)

    x = x_ref[0].astype(f32)
    y = resize(conv3x3(x)) if conv_first else conv3x3(resize(x))
    o_ref[0] = y.astype(o_ref.dtype)


# ----------------------------------------------------------------------------
# UpDownSample forward (single fused pallas_call per direction)
# ----------------------------------------------------------------------------
def updownsample_forward(x_nchw, weight_oihw, bias, scale_factor, direction):
    assert direction in ('up', 'down')
    if scale_factor == 1:
        # Matches the PyTorch module: no conv layer exists, forward is identity.
        return x_nchw

    n, cin, h, w = x_nchw.shape
    cout = weight_oihw.shape[0]

    if direction == 'up':
        # conv at (h, w), then resize to (h2, w2)   (PyTorch size computation)
        h2, w2 = int(scale_factor * h), int(scale_factor * w)
        hc, wc = h, w
        cr = cout                       # channels flowing through the resize
    else:
        # resize to (h2, w2), then conv at (h2, w2)
        h2, w2 = int(h / scale_factor), int(w / scale_factor)
        hc, wc = h2, w2
        cr = cin
    hout, wout = h2, w2

    # NCHW -> lane-dense slab (N, H, W*Cin): slab[n, y, x*Cin + ci] = x[n,ci,y,x]
    x_slab = jnp.transpose(x_nchw, (0, 2, 3, 1)).reshape(n, h, w * cin)

    s_mat, c_mat = _conv_matrices(weight_oihw, hc, wc)
    bias_row = jnp.tile(bias.astype(jnp.float32), wc).reshape(1, wc * cout)
    wh = _bilinear_matrix(h, h2)                                  # (h2, h)
    ww = _bilinear_matrix(w, w2)                                  # (w2, w)
    wwx = jnp.kron(ww.T, jnp.eye(cr, dtype=jnp.float32))          # (w*cr, w2*cr)

    mm = lambda m, k, nn: 2 * m * k * nn
    flops = n * (2 * mm(hc, hc, wc * cin)            # row-shift matmuls (dy=0,2)
                 + 3 * mm(hc, wc * cin, wc * cout)   # banded conv matmuls
                 + mm(h2, h, w * cr)                 # vertical resize
                 + mm(h2, w * cr, w2 * cr))          # horizontal resize
    bytes_accessed = 4 * (x_slab.size + s_mat.size + c_mat.size
                          + bias_row.size + wh.size + wwx.size
                          + n * hout * wout * cout)

    kernel = functools.partial(_fused_kernel, conv_first=(direction == 'up'))
    out_slab = pl.pallas_call(
        kernel,
        out_shape=jax.ShapeDtypeStruct((n, hout, wout * cout), x_nchw.dtype),
        grid=(n,),
        in_specs=[
            pl.BlockSpec((1, h, w * cin), lambda i: (i, 0, 0)),
            pl.BlockSpec(s_mat.shape, lambda i: (0, 0, 0)),
            pl.BlockSpec(c_mat.shape, lambda i: (0, 0, 0)),
            pl.BlockSpec(bias_row.shape, lambda i: (0, 0)),
            pl.BlockSpec(wh.shape, lambda i: (0, 0)),
            pl.BlockSpec(wwx.shape, lambda i: (0, 0)),
        ],
        out_specs=pl.BlockSpec((1, hout, wout * cout), lambda i: (i, 0, 0)),
        compiler_params=pltpu.CompilerParams(
            dimension_semantics=("parallel",)),
        cost_estimate=pl.CostEstimate(flops=flops, transcendentals=0,
                                      bytes_accessed=bytes_accessed),
    )(x_slab, s_mat, c_mat, bias_row, wh, wwx)

    # slab (N, Hout, Wout*Cout) -> NCHW
    return out_slab.reshape(n, hout, wout, cout).transpose(0, 3, 1, 2)


# ----------------------------------------------------------------------------
# Plain-JAX reference (mirrors the PyTorch module) for a correctness check.
# ----------------------------------------------------------------------------
def _reference_forward(x_nchw, weight_oihw, bias, scale_factor, direction):
    if scale_factor == 1:
        return x_nchw

    def conv(v):
        y = jax.lax.conv_general_dilated(
            v, weight_oihw, window_strides=(1, 1), padding=((1, 1), (1, 1)),
            dimension_numbers=('NCHW', 'OIHW', 'NCHW'))
        return y + bias[None, :, None, None]

    def resize(v, new_h, new_w):
        _, _, hh, ww = v.shape

        def axis(old, new):
            src = jnp.maximum(
                (jnp.arange(new, dtype=jnp.float32) + 0.5) * (old / new) - 0.5,
                0.0)
            i0 = jnp.floor(src).astype(jnp.int32)
            i1 = jnp.minimum(i0 + 1, old - 1)
            frac = src - i0.astype(jnp.float32)
            return i0, i1, frac

        r0, r1, rf = axis(hh, new_h)
        c0, c1, cf = axis(ww, new_w)
        t = (v[:, :, r0, :] * (1.0 - rf)[None, None, :, None]
             + v[:, :, r1, :] * rf[None, None, :, None])
        return (t[:, :, :, c0] * (1.0 - cf)[None, None, None, :]
                + t[:, :, :, c1] * cf[None, None, None, :])

    _, _, hh, ww = x_nchw.shape
    if direction == 'up':
        nh, nw = int(scale_factor * hh), int(scale_factor * ww)
        return resize(conv(x_nchw), nh, nw)
    nh, nw = int(hh / scale_factor), int(ww / scale_factor)
    return conv(resize(x_nchw, nh, nw))


# ----------------------------------------------------------------------------
# Demo
# ----------------------------------------------------------------------------
if __name__ == "__main__":
    key = jax.random.PRNGKey(0)
    k_x, k_w, k_b = jax.random.split(key, 3)

    in_channels = 4
    out_channels = 8
    scale_factor = 2
    n, h, w = 2, 16, 16

    x = jax.random.normal(k_x, (n, in_channels, h, w), jnp.float32)

    # Deterministic Conv2d(in, out, 3, 1, 1) params (synthetic init).
    fan_in = in_channels * 3 * 3
    bound = 1.0 / (fan_in ** 0.5)
    weight = jax.random.uniform(k_w, (out_channels, in_channels, 3, 3),
                                jnp.float32, -bound, bound)
    bias = jax.random.uniform(k_b, (out_channels,), jnp.float32, -bound, bound)

    for direction in ('up', 'down'):
        fwd = jax.jit(functools.partial(updownsample_forward,
                                        scale_factor=scale_factor,
                                        direction=direction))
        y = jax.block_until_ready(fwd(x, weight, bias))
        if direction == 'up':
            assert y.shape == (n, out_channels,
                               h * scale_factor, w * scale_factor)
        else:
            assert y.shape == (n, out_channels,
                               h // scale_factor, w // scale_factor)
        y_ref = _reference_forward(x, weight, bias, scale_factor, direction)
        err = float(jnp.max(jnp.abs(y - y_ref)))
        assert err < 1e-4, f"{direction}: max abs err {err}"

    print("KERNEL_OK")
</pallas_src>

<mosaic_0001>
module attributes {stable_mosaic.version = 11 : i64} {
  func.func @_fused_kernel(%arg0: i32, %arg1: memref<1x16x64xf32, #tpu.memory_space<vmem>>, %arg2: memref<3x16x16xf32, #tpu.memory_space<vmem>>, %arg3: memref<3x64x128xf32, #tpu.memory_space<vmem>>, %arg4: memref<1x128xf32, #tpu.memory_space<vmem>>, %arg5: memref<32x16xf32, #tpu.memory_space<vmem>>, %arg6: memref<128x256xf32, #tpu.memory_space<vmem>>, %arg7: memref<1x32x256xf32, #tpu.memory_space<vmem>>) attributes {dimension_semantics = [#tpu.dimension_semantics<parallel>], iteration_bounds = array<i64: 2>, scalar_prefetch = 0 : i64, scratch_operands = 0 : i64, tpu.core_type = #tpu.core_type<tc>, window_params = [{transform_indices = @transform_0, window_bounds = array<i64: 1, 16, 64>}, {pipeline_mode = #tpu.pipeline_mode<synchronous>, transform_indices = @transform_1, window_bounds = array<i64: 3, 16, 16>}, {pipeline_mode = #tpu.pipeline_mode<synchronous>, transform_indices = @transform_2, window_bounds = array<i64: 3, 64, 128>}, {pipeline_mode = #tpu.pipeline_mode<synchronous>, transform_indices = @transform_3, window_bounds = array<i64: 1, 128>}, {pipeline_mode = #tpu.pipeline_mode<synchronous>, transform_indices = @transform_4, window_bounds = array<i64: 32, 16>}, {pipeline_mode = #tpu.pipeline_mode<synchronous>, transform_indices = @transform_5, window_bounds = array<i64: 128, 256>}, {transform_indices = @transform_6, window_bounds = array<i64: 1, 32, 256>}]} {
    %c0 = arith.constant 0 : index
    %c0_0 = arith.constant 0 : index
    %c0_1 = arith.constant 0 : index
    %0 = vector.load %arg1[%c0, %c0_0, %c0_1] : memref<1x16x64xf32, #tpu.memory_space<vmem>>, vector<1x16x64xf32>
    %1 = vector.shape_cast %0 : vector<1x16x64xf32> to vector<16x64xf32>
    %c0_2 = arith.constant 0 : index
    %c0_3 = arith.constant 0 : index
    %c0_4 = arith.constant 0 : index
    %2 = vector.load %arg2[%c0_2, %c0_3, %c0_4] : memref<3x16x16xf32, #tpu.memory_space<vmem>>, vector<1x16x16xf32>
    %3 = vector.shape_cast %2 : vector<1x16x16xf32> to vector<16x16xf32>
    %cst = arith.constant dense<0.000000e+00> : vector<16x64xf32>
    %4 = tpu.matmul %3, %1, %cst {dimension_numbers = #tpu.dot_dimension_numbers<[1], [0], [0], [1], [0, 0, 1, 1], [], []>} : vector<16x16xf32>, vector<16x64xf32>, vector<16x64xf32> -> vector<16x64xf32>
    %c0_5 = arith.constant 0 : index
    %c0_6 = arith.constant 0 : index
    %c0_7 = arith.constant 0 : index
    %5 = vector.load %arg3[%c0_5, %c0_6, %c0_7] : memref<3x64x128xf32, #tpu.memory_space<vmem>>, vector<1x64x128xf32>
    %6 = vector.shape_cast %5 : vector<1x64x128xf32> to vector<64x128xf32>
    %cst_8 = arith.constant dense<0.000000e+00> : vector<16x128xf32>
    %7 = tpu.matmul %4, %6, %cst_8 {dimension_numbers = #tpu.dot_dimension_numbers<[1], [0], [0], [1], [0, 0, 1, 1], [], []>} : vector<16x64xf32>, vector<64x128xf32>, vector<16x128xf32> -> vector<16x128xf32>
    %c1 = arith.constant 1 : index
    %c0_9 = arith.constant 0 : index
    %c0_10 = arith.constant 0 : index
    %8 = vector.load %arg3[%c1, %c0_9, %c0_10] : memref<3x64x128xf32, #tpu.memory_space<vmem>>, vector<1x64x128xf32>
    %9 = vector.shape_cast %8 : vector<1x64x128xf32> to vector<64x128xf32>
    %cst_11 = arith.constant dense<0.000000e+00> : vector<16x128xf32>
    %10 = tpu.matmul %1, %9, %cst_11 {dimension_numbers = #tpu.dot_dimension_numbers<[1], [0], [0], [1], [0, 0, 1, 1], [], []>} : vector<16x64xf32>, vector<64x128xf32>, vector<16x128xf32> -> vector<16x128xf32>
    %11 = arith.addf %7, %10 : vector<16x128xf32>
    %c2 = arith.constant 2 : index
    %c0_12 = arith.constant 0 : index
    %c0_13 = arith.constant 0 : index
    %12 = vector.load %arg2[%c2, %c0_12, %c0_13] : memref<3x16x16xf32, #tpu.memory_space<vmem>>, vector<1x16x16xf32>
    %13 = vector.shape_cast %12 : vector<1x16x16xf32> to vector<16x16xf32>
    %cst_14 = arith.constant dense<0.000000e+00> : vector<16x64xf32>
    %14 = tpu.matmul %13, %1, %cst_14 {dimension_numbers = #tpu.dot_dimension_numbers<[1], [0], [0], [1], [0, 0, 1, 1], [], []>} : vector<16x16xf32>, vector<16x64xf32>, vector<16x64xf32> -> vector<16x64xf32>
    %c2_15 = arith.constant 2 : index
    %c0_16 = arith.constant 0 : index
    %c0_17 = arith.constant 0 : index
    %15 = vector.load %arg3[%c2_15, %c0_16, %c0_17] : memref<3x64x128xf32, #tpu.memory_space<vmem>>, vector<1x64x128xf32>
    %16 = vector.shape_cast %15 : vector<1x64x128xf32> to vector<64x128xf32>
    %cst_18 = arith.constant dense<0.000000e+00> : vector<16x128xf32>
    %17 = tpu.matmul %14, %16, %cst_18 {dimension_numbers = #tpu.dot_dimension_numbers<[1], [0], [0], [1], [0, 0, 1, 1], [], []>} : vector<16x64xf32>, vector<64x128xf32>, vector<16x128xf32> -> vector<16x128xf32>
    %18 = arith.addf %11, %17 : vector<16x128xf32>
    %c0_19 = arith.constant 0 : index
    %c0_20 = arith.constant 0 : index
    %19 = vector.load %arg4[%c0_19, %c0_20] : memref<1x128xf32, #tpu.memory_space<vmem>>, vector<1x128xf32>
    %20 = vector.broadcast %19 : vector<1x128xf32> to vector<16x128xf32>
    %21 = arith.addf %18, %20 : vector<16x128xf32>
    %c0_21 = arith.constant 0 : index
    %c0_22 = arith.constant 0 : index
    %22 = vector.load %arg5[%c0_21, %c0_22] : memref<32x16xf32, #tpu.memory_space<vmem>>, vector<32x16xf32>
    %cst_23 = arith.constant dense<0.000000e+00> : vector<32x128xf32>
    %23 = tpu.matmul %22, %21, %cst_23 {dimension_numbers = #tpu.dot_dimension_numbers<[1], [0], [0], [1], [0, 0, 1, 1], [], []>} : vector<32x16xf32>, vector<16x128xf32>, vector<32x128xf32> -> vector<32x128xf32>
    %c0_24 = arith.constant 0 : index
    %c0_25 = arith.constant 0 : index
    %24 = vector.load %arg6[%c0_24, %c0_25] : memref<128x256xf32, #tpu.memory_space<vmem>>, vector<128x256xf32>
    %cst_26 = arith.constant dense<0.000000e+00> : vector<32x256xf32>
    %25 = tpu.matmul %23, %24, %cst_26 {dimension_numbers = #tpu.dot_dimension_numbers<[1], [0], [0], [1], [0, 0, 1, 1], [], []>} : vector<32x128xf32>, vector<128x256xf32>, vector<32x256xf32> -> vector<32x256xf32>
    %c0_27 = arith.constant 0 : index
    %c0_28 = arith.constant 0 : index
    %c0_29 = arith.constant 0 : index
    %26 = vector.load %arg7[%c0_27, %c0_28, %c0_29] : memref<1x32x256xf32, #tpu.memory_space<vmem>>, vector<1x32x256xf32>
    %27 = vector.shape_cast %26 : vector<1x32x256xf32> to vector<32x256xf32>
    %28 = vector.shape_cast %25 : vector<32x256xf32> to vector<1x32x256xf32>
    tpu.vector_store %arg7[%c0_27, %c0_28, %c0_29], %28 {strides = array<i32>} : memref<1x32x256xf32, #tpu.memory_space<vmem>>, vector<1x32x256xf32>,
    return
  }
  func.func @transform_0(%arg0: i32) -> (i32, i32, i32) {
    %c0_i32 = arith.constant 0 : i32
    %c0_i32_0 = arith.constant 0 : i32
    %c0_i32_1 = arith.constant 0 : i32
    return %arg0, %c0_i32, %c0_i32_0 : i32, i32, i32
  }
  func.func @transform_1(%arg0: i32) -> (i32, i32, i32) {
    %c0_i32 = arith.constant 0 : i32
    %c0_i32_0 = arith.constant 0 : i32
    %c0_i32_1 = arith.constant 0 : i32
    %c0_i32_2 = arith.constant 0 : i32
    return %c0_i32, %c0_i32_0, %c0_i32_1 : i32, i32, i32
  }
  func.func @transform_2(%arg0: i32) -> (i32, i32, i32) {
    %c0_i32 = arith.constant 0 : i32
    %c0_i32_0 = arith.constant 0 : i32
    %c0_i32_1 = arith.constant 0 : i32
    %c0_i32_2 = arith.constant 0 : i32
    return %c0_i32, %c0_i32_0, %c0_i32_1 : i32, i32, i32
  }
  func.func @transform_3(%arg0: i32) -> (i32, i32) {
    %c0_i32 = arith.constant 0 : i32
    %c0_i32_0 = arith.constant 0 : i32
    %c0_i32_1 = arith.constant 0 : i32
    return %c0_i32, %c0_i32_0 : i32, i32
  }
  func.func @transform_4(%arg0: i32) -> (i32, i32) {
    %c0_i32 = arith.constant 0 : i32
    %c0_i32_0 = arith.constant 0 : i32
    %c0_i32_1 = arith.constant 0 : i32
    return %c0_i32, %c0_i32_0 : i32, i32
  }
  func.func @transform_5(%arg0: i32) -> (i32, i32) {
    %c0_i32 = arith.constant 0 : i32
    %c0_i32_0 = arith.constant 0 : i32
    %c0_i32_1 = arith.constant 0 : i32
    return %c0_i32, %c0_i32_0 : i32, i32
  }
  func.func @transform_6(%arg0: i32) -> (i32, i32, i32) {
    %c0_i32 = arith.constant 0 : i32
    %c0_i32_0 = arith.constant 0 : i32
    %c0_i32_1 = arith.constant 0 : i32
    return %arg0, %c0_i32, %c0_i32_0 : i32, i32, i32
  }
}

</mosaic_0001>

<llo_original>
// kernel: tile.8
$region0: #{tile.8}
  #allocation0 [shape = 's32[1]{0}', space=sflag, size = 0x4, scoped, tag = 'scoped memory for tile.8']
  %s0 = inlined_call_operand.vmem [shape: f32[8], index: 0, kind: input, shape index: {}]
  %s1 = inlined_call_operand.vmem [shape: f32[16,8], index: 1, kind: output, shape index: {}]
  // Predicated region
  $region2: #{tile.8} parent=0 // pred_check
    _
  $region3: #{tile.8} parent=0 // pred_check_branch
    %3 = sbr.rel (0) target = $region5
  $region4: #{tile.8} parent=0 // pred_region
    _
  $region5: #{tile.8} parent=0 // pred_fallthru
    _
  %v4 = vld [vmem:[%s0] ss:$0 sm:$0xff]
  %5 = vst [vmem:[%s1] sm:$0xff] %v4
  %s6 = scalar_lea.vmem %s1, 8
  %7 = vst [vmem:[%s6] sm:$0xff] %v4

// kernel: tile.9
$region0: #{tile.9}
  %s0 = inlined_call_operand.vmem [shape: f32[16,8], index: 0, kind: input, shape index: {}]
  %s1 = inlined_call_operand.vmem [shape: f32[1,128], index: 1, kind: output, shape index: {}]
  $region1: #{tile.9} parent=0
    #allocation0 [shape = 'u8[4096]{0}', space=vmem, size = 0x1000, scoped, tag = 'scoped mem for output reshape']
    %v2 = vld [vmem:[%s0] sm:$0x1]
    %vm3 = vcmask 64512
    %4 = vst.msk [vmem:[#allocation0] sm:$0x1] %vm3, %v2
    %s5 = scalar_lea.vmem %s0, 15
    %v6 = vld [vmem:[%s5] sm:$0x1]
    %7 = vrot.lane.b32.xlu0 %v6, 120
    %v8 = vpop.permute.xlu0 %7
    %vm9 = vcmask 1048512
    %10 = vst.msk [vmem:[#allocation0] sm:$0x1] %vm9, %v8
    %s11 = scalar_lea.vmem %s0, 14
    %v12 = vld [vmem:[%s11] sm:$0x1]
    %13 = vrot.lane.b32.xlu0 %v12, 112
    %v14 = vpop.permute.xlu0 %13
    %vm15 = vcmask 982912
    %16 = vst.msk [vmem:[#allocation0] sm:$0x1] %vm15, %v14
    %s17 = scalar_lea.vmem %s0, 13
    %v18 = vld [vmem:[%s17] sm:$0x1]
    %19 = vrot.lane.b32.xlu0 %v18, 104
    %v20 = vpop.permute.xlu0 %19
    %vm21 = vcmask 917312
    %22 = vst.msk [vmem:[#allocation0] sm:$0x1] %vm21, %v20
    %s23 = scalar_lea.vmem %s0, 12
    %v24 = vld [vmem:[%s23] sm:$0x1]
    %25 = vrot.lane.b32.xlu0 %v24, 96
    %v26 = vpop.permute.xlu0 %25
    %vm27 = vcmask 851712
    %28 = vst.msk [vmem:[#allocation0] sm:$0x1] %vm27, %v26
    %s29 = scalar_lea.vmem %s0, 11
    %v30 = vld [vmem:[%s29] sm:$0x1]
    %31 = vrot.lane.b32.xlu0 %v30, 88
    %v32 = vpop.permute.xlu0 %31
    %vm33 = vcmask 786112
    %34 = vst.msk [vmem:[#allocation0] sm:$0x1] %vm33, %v32
    %s35 = scalar_lea.vmem %s0, 10
    %v36 = vld [vmem:[%s35] sm:$0x1]
    %37 = vrot.lane.b32.xlu0 %v36, 80
    %v38 = vpop.permute.xlu0 %37
    %vm39 = vcmask 720512
    %40 = vst.msk [vmem:[#allocation0] sm:$0x1] %vm39, %v38
    %s41 = scalar_lea.vmem %s0, 9
    %v42 = vld [vmem:[%s41] sm:$0x1]
    %43 = vrot.lane.b32.xlu0 %v42, 72
    %v44 = vpop.permute.xlu0 %43
    %vm45 = vcmask 654912
    %46 = vst.msk [vmem:[#allocation0] sm:$0x1] %vm45, %v44
    %s47 = scalar_lea.vmem %s0, 8
    %v48 = vld [vmem:[%s47] sm:$0x1]
    %49 = vrot.lane.b32.xlu0 %v48, 64
    %v50 = vpop.permute.xlu0 %49
    %vm51 = vcmask 589312
    %52 = vst.msk [vmem:[#allocation0] sm:$0x1] %vm51, %v50
    %s53 = scalar_lea.vmem %s0, 7
    %v54 = vld [vmem:[%s53] sm:$0x1]
    %55 = vrot.lane.b32.xlu0 %v54, 56
    %v56 = vpop.permute.xlu0 %55
    %vm57 = vcmask 523712
    %58 = vst.msk [vmem:[#allocation0] sm:$0x1] %vm57, %v56
    %s59 = scalar_lea.vmem %s0, 6
    %v60 = vld [vmem:[%s59] sm:$0x1]
    %61 = vrot.lane.b32.xlu0 %v60, 48
    %v62 = vpop.permute.xlu0 %61
    %vm63 = vcmask 458112
    %64 = vst.msk [vmem:[#allocation0] sm:$0x1] %vm63, %v62
    %s65 = scalar_lea.vmem %s0, 5
    %v66 = vld [vmem:[%s65] sm:$0x1]
    %67 = vrot.lane.b32.xlu0 %v66, 40
    %v68 = vpop.permute.xlu0 %67
    %vm69 = vcmask 392512
    %70 = vst.msk [vmem:[#allocation0] sm:$0x1] %vm69, %v68
    %s71 = scalar_lea.vmem %s0, 4
    %v72 = vld [vmem:[%s71] sm:$0x1]
    %73 = vrot.lane.b32.xlu0 %v72, 32
    %v74 = vpop.permute.xlu0 %73
    %vm75 = vcmask 326912
    %76 = vst.msk [vmem:[#allocation0] sm:$0x1] %vm75, %v74
    %s77 = scalar_lea.vmem %s0, 3
    %v78 = vld [vmem:[%s77] sm:$0x1]
    %79 = vrot.lane.b32.xlu0 %v78, 24
    %v80 = vpop.permute.xlu0 %79
    %vm81 = vcmask 261312
    %82 = vst.msk [vmem:[#allocation0] sm:$0x1] %vm81, %v80
    %s83 = scalar_lea.vmem %s0, 2
    %v84 = vld [vmem:[%s83] sm:$0x1]
    %85 = vrot.lane.b32.xlu0 %v84, 16
    %v86 = vpop.permute.xlu0 %85
    %vm87 = vcmask 195712
    %88 = vst.msk [vmem:[#allocation0] sm:$0x1] %vm87, %v86
    %s89 = scalar_lea.vmem %s0, 1
    %v90 = vld [vmem:[%s89] sm:$0x1]
    %91 = vrot.lane.b32.xlu0 %v90, 8
    %v92 = vpop.permute.xlu0 %91
    %vm93 = vcmask 130112
    %94 = vst.msk [vmem:[#allocation0] sm:$0x1] %vm93, %v92
    %s96 = ssub.s32 2, 1
    %v97 = vld [vmem:[#allocation0] sm:%s96]
    %s99 = ssub.s32 2, 1
    %100 = vst [vmem:[%s1] sm:%s99] %v97

// kernel: updownsample_forward.1
$region0: #{updownsample_forward.1}
  #allocation0 [shape = 'u32[]', space=smem, size = 0x4, offset = 0x4, fixed_abs, tag = 'smem constant byte address 0x4 - core index']
  #allocation1 [shape = 'u32[72,128]{1,0:T(1,128)}', space=vmem, size = 0x9000, scoped, tag = 'internal scratch']
  %s0 = inlined_call_operand.vmem [shape: f32[2,16,64], index: 0, kind: input, shape index: {}]
  %s1 = inlined_call_operand.vmem [shape: f32[3,16,16], index: 1, kind: input, shape index: {}]
  %s2 = inlined_call_operand.vmem [shape: f32[3,64,128], index: 2, kind: input, shape index: {}]
  %s3 = inlined_call_operand.vmem [shape: f32[1,128], index: 3, kind: input, shape index: {}]
  %s4 = inlined_call_operand.vmem [shape: f32[32,16], index: 4, kind: input, shape index: {}]
  %s5 = inlined_call_operand.vmem [shape: f32[128,256], index: 5, kind: input, shape index: {}]
  %s6 = inlined_call_operand.vmem [shape: f32[2,32,256], index: 6, kind: output, shape index: {}]
  %s7 = sld [smem:[#allocation0]]
  $region57: #{updownsample_forward.1} parent=0
    _
  %s9 = ssub.s32 1, %s7
  %s10 = scalar_select 0, %s9, %s7
  loop: start=0, step=1, limit=4
  $region2: #{updownsample_forward.1} parent=0 // loop_pre_header
    _
  $region3: #{updownsample_forward.1} parent=0 // loop_header
    %s12 = sphi 0, %s16
    %p13 = scmp.ge.s32.totalorder %s12, 4
    %s22 = sphi 0, %s24
    %s25 = sphi 0, %s22
    %s26 = sphi 0, %s25
    %s42 = sphi 0, %s26
    %s46 = sphi 0, %s46
    %s48 = sphi 0, %s46
    %s49 = sphi 0, %s48
    %s63 = sphi 0, %s49
    %s67 = sphi 0, %s67
    %s69 = sphi 0, %s67
    %s70 = sphi 0, %s69
    %s84 = sphi 0, %s70
    %s88 = sphi 0, %s88
    %s90 = sphi 0, %s88
    %s91 = sphi 0, %s90
    %s105 = sphi 0, %s91
    %s109 = sphi 0, %s109
    %s111 = sphi 0, %s109
    %s112 = sphi 0, %s111
    %s126 = sphi 0, %s112
    %s130 = sphi 0, %s130
    %s132 = sphi 0, %s130
    %s133 = sphi 0, %s132
    %s147 = sphi 0, %s133
    %s153 = sphi 0, %s155
    %s156 = sphi 0, %s153
    %s157 = sphi 0, %s156
    %s173 = sphi 0, %s157
  $region4: #{updownsample_forward.1} parent=0 // loop_header_branch
    %15 = sbr.rel (%p13) target = $region8
  $region5: #{updownsample_forward.1} parent=0 // loop_body
    %s17 = ssub.s32 %s12, 1
    %s18 = ssub.s32 %s12, 2
    %s19 = sadd.s32 %s12, 1
    %s20 = ssub.s32 %s12, %s19
    %p21 = scmp.eq.s32.totalorder %s20, 0
    %s23 = sadd.s32 %s22, 1
    %s24 = scalar_select %p21, %s22, %s23
    %p27 = pneg %p21
    %p28 = scmp.eq.s32.totalorder %s12, 1
    %p29 = por %p27, %p28
    %p30 = scmp.ne.s32.totalorder %s22, %s25
    %p31 = scmp.eq.s32.totalorder %s12, 0
    %p32 = por %p30, %p31
    %p33 = scmp.ne.s32.totalorder %s22, %s25
    %p34 = scmp.eq.s32.totalorder %s17, 1
    %p35 = por %p33, %p34
    %p36 = scmp.ne.s32.totalorder %s25, %s26
    %p37 = scmp.eq.s32.totalorder %s17, 0
    %p38 = por %p36, %p37
    %p39 = scmp.ne.s32.totalorder %s25, %s26
    %p40 = scmp.eq.s32.totalorder %s18, 1
    %p41 = por %p39, %p40
    %p43 = scmp.ne.s32.totalorder %s26, %s42
    %p44 = scmp.eq.s32.totalorder %s18, 0
    %p45 = por %p43, %p44
    %s47 = sadd.s32 %s46, 1
    %p50 = scmp.eq.s32.totalorder %s12, 1
    %p51 = scmp.ne.s32.totalorder %s46, %s48
    %p52 = scmp.eq.s32.totalorder %s12, 0
    %p53 = por %p51, %p52
    %p54 = scmp.ne.s32.totalorder %s46, %s48
    %p55 = scmp.eq.s32.totalorder %s17, 1
    %p56 = por %p54, %p55
    %p57 = scmp.ne.s32.totalorder %s48, %s49
    %p58 = scmp.eq.s32.totalorder %s17, 0
    %p59 = por %p57, %p58
    %p60 = scmp.ne.s32.totalorder %s48, %s49
    %p61 = scmp.eq.s32.totalorder %s18, 1
    %p62 = por %p60, %p61
    %p64 = scmp.ne.s32.totalorder %s49, %s63
    %p65 = scmp.eq.s32.totalorder %s18, 0
    %p66 = por %p64, %p65
    %s68 = sadd.s32 %s67, 1
    %p71 = scmp.eq.s32.totalorder %s12, 1
    %p72 = scmp.ne.s32.totalorder %s67, %s69
    %p73 = scmp.eq.s32.totalorder %s12, 0
    %p74 = por %p72, %p73
    %p75 = scmp.ne.s32.totalorder %s67, %s69
    %p76 = scmp.eq.s32.totalorder %s17, 1
    %p77 = por %p75, %p76
    %p78 = scmp.ne.s32.totalorder %s69, %s70
    %p79 = scmp.eq.s32.totalorder %s17, 0
    %p80 = por %p78, %p79
    %p81 = scmp.ne.s32.totalorder %s69, %s70
    %p82 = scmp.eq.s32.totalorder %s18, 1
    %p83 = por %p81, %p82
    %p85 = scmp.ne.s32.totalorder %s70, %s84
    %p86 = scmp.eq.s32.totalorder %s18, 0
    %p87 = por %p85, %p86
    %s89 = sadd.s32 %s88, 1
    %p92 = scmp.eq.s32.totalorder %s12, 1
    %p93 = scmp.ne.s32.totalorder %s88, %s90
    %p94 = scmp.eq.s32.totalorder %s12, 0
    %p95 = por %p93, %p94
    %p96 = scmp.ne.s32.totalorder %s88, %s90
    %p97 = scmp.eq.s32.totalorder %s17, 1
    %p98 = por %p96, %p97
    %p99 = scmp.ne.s32.totalorder %s90, %s91
    %p100 = scmp.eq.s32.totalorder %s17, 0
    %p101 = por %p99, %p100
    %p102 = scmp.ne.s32.totalorder %s90, %s91
    %p103 = scmp.eq.s32.totalorder %s18, 1
    %p104 = por %p102, %p103
    %p106 = scmp.ne.s32.totalorder %s91, %s105
    %p107 = scmp.eq.s32.totalorder %s18, 0
    %p108 = por %p106, %p107
    %s110 = sadd.s32 %s109, 1
    %p113 = scmp.eq.s32.totalorder %s12, 1
    %p114 = scmp.ne.s32.totalorder %s109, %s111
    %p115 = scmp.eq.s32.totalorder %s12, 0
    %p116 = por %p114, %p115
    %p117 = scmp.ne.s32.totalorder %s109, %s111
    %p118 = scmp.eq.s32.totalorder %s17, 1
    %p119 = por %p117, %p118
    %p120 = scmp.ne.s32.totalorder %s111, %s112
    %p121 = scmp.eq.s32.totalorder %s17, 0
    %p122 = por %p120, %p121
    %p123 = scmp.ne.s32.totalorder %s111, %s112
    %p124 = scmp.eq.s32.totalorder %s18, 1
    %p125 = por %p123, %p124
    %p127 = scmp.ne.s32.totalorder %s112, %s126
    %p128 = scmp.eq.s32.totalorder %s18, 0
    %p129 = por %p127, %p128
    %s131 = sadd.s32 %s130, 1
    %p134 = scmp.eq.s32.totalorder %s12, 1
    %p135 = scmp.ne.s32.totalorder %s130, %s132
    %p136 = scmp.eq.s32.totalorder %s12, 0
    %p137 = por %p135, %p136
    %p138 = scmp.ne.s32.totalorder %s130, %s132
    %p139 = scmp.eq.s32.totalorder %s17, 1
    %p140 = por %p138, %p139
    %p141 = scmp.ne.s32.totalorder %s132, %s133
    %p142 = scmp.eq.s32.totalorder %s17, 0
    %p143 = por %p141, %p142
    %p144 = scmp.ne.s32.totalorder %s132, %s133
    %p145 = scmp.eq.s32.totalorder %s18, 1
    %p146 = por %p144, %p145
    %p148 = scmp.ne.s32.totalorder %s133, %s147
    %p149 = scmp.eq.s32.totalorder %s18, 0
    %p150 = por %p148, %p149
    %s151 = ssub.s32 %s12, %s19
    %p152 = scmp.eq.s32.totalorder %s151, 0
    %s154 = sadd.s32 %s153, 1
    %s155 = scalar_select %p152, %s153, %s154
    %p158 = pneg %p152
    %p159 = scmp.eq.s32.totalorder %s12, 1
    %p160 = por %p158, %p159
    %p161 = scmp.ne.s32.totalorder %s153, %s156
    %p162 = scmp.eq.s32.totalorder %s12, 0
    %p163 = por %p161, %p162
    %p164 = scmp.ne.s32.totalorder %s153, %s156
    %p165 = scmp.eq.s32.totalorder %s17, 1
    %p166 = por %p164, %p165
    %p167 = scmp.ne.s32.totalorder %s156, %s157
    %p168 = scmp.eq.s32.totalorder %s17, 0
    %p169 = por %p167, %p168
    %p170 = scmp.ne.s32.totalorder %s156, %s157
    %p171 = scmp.eq.s32.totalorder %s18, 1
    %p172 = por %p170, %p171
    %p174 = scmp.ne.s32.totalorder %s157, %s173
    %p175 = scmp.eq.s32.totalorder %s18, 0
    %p176 = por %p174, %p175
    %p177 = scmp.le.s32.totalorder 1, %s12
    %p178 = scmp.lt.s32.totalorder %s12, 3
    %p179 = pnand %p177, %p178
    %p180 = pneg %p179
    // Predicated region
    $region9: #{updownsample_forward.1} parent=5 // pred_check
      _
    $region10: #{updownsample_forward.1} parent=5 // pred_check_branch
      %182 = sbr.rel (%p179) target = $region12
    $region11: #{updownsample_forward.1} parent=5 // pred_region
      %s183 = ssub.s32 %s12, 1
      // Predicated region
      $region13: #{updownsample_forward.1} parent=11 // pred_check
        %p184 = pneg %p59
      $region14: #{updownsample_forward.1} parent=11 // pred_check_branch
        %186 = sbr.rel (%p184) target = $region16
      $region15: #{updownsample_forward.1} parent=11 // pred_region
        _
      $region16: #{updownsample_forward.1} parent=11 // pred_fallthru
        _
      // Predicated region
      $region17: #{updownsample_forward.1} parent=11 // pred_check
        %p187 = pneg %p80
      $region18: #{updownsample_forward.1} parent=11 // pred_check_branch
        %189 = sbr.rel (%p187) target = $region20
      $region19: #{updownsample_forward.1} parent=11 // pred_region
        _
      $region20: #{updownsample_forward.1} parent=11 // pred_fallthru
        _
      // Predicated region
      $region21: #{updownsample_forward.1} parent=11 // pred_check
        %p190 = pneg %p101
      $region22: #{updownsample_forward.1} parent=11 // pred_check_branch
        %192 = sbr.rel (%p190) target = $region24
      $region23: #{updownsample_forward.1} parent=11 // pred_region
        _
      $region24: #{updownsample_forward.1} parent=11 // pred_fallthru
        _
      // Predicated region
      $region25: #{updownsample_forward.1} parent=11 // pred_check
        %p193 = pneg %p122
      $region26: #{updownsample_forward.1} parent=11 // pred_check_branch
        %195 = sbr.rel (%p193) target = $region28
      $region27: #{updownsample_forward.1} parent=11 // pred_region
        _
      $region28: #{updownsample_forward.1} parent=11 // pred_fallthru
        _
      // Predicated region
      $region29: #{updownsample_forward.1} parent=11 // pred_check
        %p196 = pneg %p143
      $region30: #{updownsample_forward.1} parent=11 // pred_check_branch
        %198 = sbr.rel (%p196) target = $region32
      $region31: #{updownsample_forward.1} parent=11 // pred_region
        _
      $region32: #{updownsample_forward.1} parent=11 // pred_fallthru
        _
    $region12: #{updownsample_forward.1} parent=5 // pred_fallthru
      _
    %p199 = scmp.lt.s32.totalorder %s12, 2
    // Predicated region
    $region33: #{updownsample_forward.1} parent=5 // pred_check
      %p200 = pneg %p199
    $region34: #{updownsample_forward.1} parent=5 // pred_check_branch
      %202 = sbr.rel (%p200) target = $region36
    $region35: #{updownsample_forward.1} parent=5 // pred_region
      // Predicated region
      $region37: #{updownsample_forward.1} parent=35 // pred_check
        %p203 = pneg %p32
      $region38: #{updownsample_forward.1} parent=35 // pred_check_branch
        %205 = sbr.rel (%p203) target = $region40
      $region39: #{updownsample_forward.1} parent=35 // pred_region
        %p206 = scmp.lt.s32.totalorder %s12, 1
        %s207 = scalar_select %p206, %s12, 1
        %s208 = smul.addr %s207, 2
        %s209 = smul.addr %s208, 8
        %s210 = scalar_lea.vmem %s0, %s209
      $region40: #{updownsample_forward.1} parent=35 // pred_fallthru
        _
    $region36: #{updownsample_forward.1} parent=5 // pred_fallthru
      _
    %p211 = scmp.le.s32.totalorder 1, %s12
    %p212 = scmp.lt.s32.totalorder %s12, 3
    %p213 = pnand %p211, %p212
    %p214 = pneg %p213
    // Predicated region
    $region41: #{updownsample_forward.1} parent=5 // pred_check
      _
    $region42: #{updownsample_forward.1} parent=5 // pred_check_branch
      %216 = sbr.rel (%p213) target = $region44
    $region43: #{updownsample_forward.1} parent=5 // pred_region
      %s217 = ssub.s32 %s12, 1
      %p218 = scmp.lt.s32.totalorder %s17, 1
      %s219 = scalar_select %p218, %s17, 1
      %s220 = smul.addr %s219, 2
      %s221 = smul.addr %s220, 8
      %s222 = scalar_lea.vmem %s0, %s221
      %p223 = pneg %p38
      %p224 = pneg %p35
      %p225 = pneg %p59
      %p226 = pneg %p56
      %p227 = pneg %p80
      %p228 = pneg %p77
      %p229 = pneg %p101
      %p230 = pneg %p98
      %p231 = pneg %p122
      %p232 = pneg %p119
      %p233 = pneg %p143
      %p234 = pneg %p140
      %p235 = pneg %p169
      %p236 = pneg %p166
      %p237 = scmp.lt.s32.totalorder %s17, 1
      %s238 = scalar_select %p237, %s17, 1
      %s239 = smul.addr %s238, 8
      %s240 = smul.addr %s239, 8
      %s241 = scalar_lea.vmem %s6, %s240
      %p242 = scmp.lt.s32.totalorder %s17, 1
      %s243 = scalar_select %p242, %s17, 1
      %s244 = smul.addr %s243, 2
      %s245 = smul.addr %s244, 8
      %s246 = scalar_lea.vmem %s0, %s245
      %p247 = scmp.lt.s32.totalorder %s17, 1
      %s248 = scalar_select %p247, %s17, 1
      %s249 = smul.addr %s248, 8
      %s250 = smul.addr %s249, 8
      %s251 = scalar_lea.vmem %s6, %s250
      %v252 = vld [vmem:[%s246] sm:$0xff]
      %v253 = vld [vmem:[%s246 + $0x8] sm:$0xff]
      %v254 = vld [vmem:[%s1] sm:$0xff]
      %v255 = vld [vmem:[%s1 + $0x8] sm:$0xff]
      %vm256 = vcmask 130048
      %v258 = vsel %vm256, %v254, 0
      %v261 = vsel %vm256, %v255, 0
      %263 = vmatpush.msra.mxu0 0.0
      %264 = vmatpush.msra.mxu0 0.0
      %265 = vmatpush.msra.mxu0 0.0
      %266 = vmatpush.msra.mxu0 0.0
      %267 = vmatpush.msra.mxu0 0.0
      %268 = vmatpush.msra.mxu0 0.0
      %269 = vmatpush.msra.mxu0 0.0
      %270 = vmatpush.msra.mxu0 0.0
      %271 = vmatpush.msra.mxu0 0.0
      %272 = vmatpush.msra.mxu0 0.0
      %273 = vmatpush.msra.mxu0 0.0
      %274 = vmatpush.msra.mxu0 0.0
      %275 = vmatpush.msra.mxu0 0.0
      %276 = vmatpush.msra.mxu0 0.0
      %277 = vmatpush.msra.mxu0 %v253
      %278 = vmatpush.msra.mxu0 %v252
      %279 = vmatmul.f32.gmra.mxu0 %v258
      %v280 = vpop.f32.mrf.mxu0
      %v281 = vadd.f32 0.0, %v280
      %282 = vmatmul.f32.gmra.mxu0 %v261
      %v283 = vpop.f32.mrf.mxu0
      %v284 = vadd.f32 0.0, %v283
      %285 = vdwg.mxu0
      %v286 = vld [vmem:[%s2] sm:$0xff]
      %v287 = vld [vmem:[%s2 + $0x8] sm:$0xff]
      %v288 = vld [vmem:[%s2 + $0x10] sm:$0xff]
      %v289 = vld [vmem:[%s2 + $0x18] sm:$0xff]
      %v290 = vld [vmem:[%s2 + $0x20] sm:$0xff]
      %v291 = vld [vmem:[%s2 + $0x28] sm:$0xff]
      %v292 = vld [vmem:[%s2 + $0x30] sm:$0xff]
      %v293 = vld [vmem:[%s2 + $0x38] sm:$0xff]
      %s294 = scalar_lea.vmem %s2, 64
      %v295 = vld [vmem:[%s294] sm:$0xff]
      %v296 = vld [vmem:[%s294 + $0x8] sm:$0xff]
      %v297 = vld [vmem:[%s294 + $0x10] sm:$0xff]
      %v298 = vld [vmem:[%s294 + $0x18] sm:$0xff]
      %v299 = vld [vmem:[%s294 + $0x20] sm:$0xff]
      %v300 = vld [vmem:[%s294 + $0x28] sm:$0xff]
      %v301 = vld [vmem:[%s294 + $0x30] sm:$0xff]
      %v302 = vld [vmem:[%s294 + $0x38] sm:$0xff]
      %vm303 = vcmask 523264
      %v305 = vsel %vm303, %v252, 0
      %v308 = vsel %vm303, %v253, 0
      %310 = vmatpush.msra.mxu0 0.0
      %311 = vmatpush.msra.mxu0 0.0
      %312 = vmatpush.msra.mxu0 0.0
      %313 = vmatpush.msra.mxu0 0.0
      %314 = vmatpush.msra.mxu0 0.0
      %315 = vmatpush.msra.mxu0 0.0
      %316 = vmatpush.msra.mxu0 0.0
      %317 = vmatpush.msra.mxu0 0.0
      %318 = vmatpush.msra.mxu0 %v302
      %319 = vmatpush.msra.mxu0 %v301
      %320 = vmatpush.msra.mxu0 %v300
      %321 = vmatpush.msra.mxu0 %v299
      %322 = vmatpush.msra.mxu0 %v298
      %323 = vmatpush.msra.mxu0 %v297
      %324 = vmatpush.msra.mxu0 %v296
      %325 = vmatpush.msra.mxu0 %v295
      %326 = vmatmul.f32.gmra.mxu0 %v305
      %v327 = vpop.f32.mrf.mxu0
      %v328 = vadd.f32 0.0, %v327
      %329 = vmatmul.f32.gmra.mxu0 %v308
      %v330 = vpop.f32.mrf.mxu0
      %v331 = vadd.f32 0.0, %v330
      %332 = vdwg.mxu0
      %v334 = vsel %vm303, %v281, 0
      %v337 = vsel %vm303, %v284, 0
      %339 = vmatpush.msra.mxu0 0.0
      %340 = vmatpush.msra.mxu0 0.0
      %341 = vmatpush.msra.mxu0 0.0
      %342 = vmatpush.msra.mxu0 0.0
      %343 = vmatpush.msra.mxu0 0.0
      %344 = vmatpush.msra.mxu0 0.0
      %345 = vmatpush.msra.mxu0 0.0
      %346 = vmatpush.msra.mxu0 0.0
      %347 = vmatpush.msra.mxu0 %v293
      %348 = vmatpush.msra.mxu0 %v292
      %349 = vmatpush.msra.mxu0 %v291
      %350 = vmatpush.msra.mxu0 %v290
      %351 = vmatpush.msra.mxu0 %v289
      %352 = vmatpush.msra.mxu0 %v288
      %353 = vmatpush.msra.mxu0 %v287
      %354 = vmatpush.msra.mxu0 %v286
      %355 = vmatmul.f32.gmra.mxu0 %v334
      %v356 = vpop.f32.mrf.mxu0
      %v357 = vadd.f32 %v328, %v356
      %358 = vmatmul.f32.gmra.mxu0 %v337
      %v359 = vpop.f32.mrf.mxu0
      %v360 = vadd.f32 %v331, %v359
      %361 = vdwg.mxu0
      %s362 = scalar_lea.vmem %s1, 32
      %v363 = vld [vmem:[%s362] sm:$0xff]
      %v364 = vld [vmem:[%s362 + $0x8] sm:$0xff]
      %v366 = vsel %vm256, %v363, 0
      %v369 = vsel %vm256, %v364, 0
      %371 = vmatpush.msra.mxu0 0.0
      %372 = vmatpush.msra.mxu0 0.0
      %373 = vmatpush.msra.mxu0 0.0
      %374 = vmatpush.msra.mxu0 0.0
      %375 = vmatpush.msra.mxu0 0.0
      %376 = vmatpush.msra.mxu0 0.0
      %377 = vmatpush.msra.mxu0 0.0
      %378 = vmatpush.msra.mxu0 0.0
      %379 = vmatpush.msra.mxu0 0.0
      %380 = vmatpush.msra.mxu0 0.0
      %381 = vmatpush.msra.mxu0 0.0
      %382 = vmatpush.msra.mxu0 0.0
      %383 = vmatpush.msra.mxu0 0.0
      %384 = vmatpush.msra.mxu0 0.0
      %385 = vmatpush.msra.mxu0 %v253
      %386 = vmatpush.msra.mxu0 %v252
      %387 = vmatmul.f32.gmra.mxu0 %v366
      %v388 = vpop.f32.mrf.mxu0
      %v389 = vadd.f32 0.0, %v388
      %390 = vmatmul.f32.gmra.mxu0 %v369
      %v391 = vpop.f32.mrf.mxu0
      %v392 = vadd.f32 0.0, %v391
      %393 = vdwg.mxu0
      %s394 = scalar_lea.vmem %s2, 128
      %v395 = vld [vmem:[%s394] sm:$0xff]
      %v396 = vld [vmem:[%s394 + $0x8] sm:$0xff]
      %v397 = vld [vmem:[%s394 + $0x10] sm:$0xff]
      %v398 = vld [vmem:[%s394 + $0x18] sm:$0xff]
      %v399 = vld [vmem:[%s394 + $0x20] sm:$0xff]
      %v400 = vld [vmem:[%s394 + $0x28] sm:$0xff]
      %v401 = vld [vmem:[%s394 + $0x30] sm:$0xff]
      %v402 = vld [vmem:[%s394 + $0x38] sm:$0xff]
      %v404 = vsel %vm303, %v389, 0
      %v407 = vsel %vm303, %v392, 0
      %409 = vmatpush.msra.mxu0 0.0
      %410 = vmatpush.msra.mxu0 0.0
      %411 = vmatpush.msra.mxu0 0.0
      %412 = vmatpush.msra.mxu0 0.0
      %413 = vmatpush.msra.mxu0 0.0
      %414 = vmatpush.msra.mxu0 0.0
      %415 = vmatpush.msra.mxu0 0.0
      %416 = vmatpush.msra.mxu0 0.0
      %417 = vmatpush.msra.mxu0 %v402
      %418 = vmatpush.msra.mxu0 %v401
      %419 = vmatpush.msra.mxu0 %v400
      %420 = vmatpush.msra.mxu0 %v399
      %421 = vmatpush.msra.mxu0 %v398
      %422 = vmatpush.msra.mxu0 %v397
      %423 = vmatpush.msra.mxu0 %v396
      %424 = vmatpush.msra.mxu0 %v395
      %425 = vmatmul.f32.gmra.mxu0 %v404
      %v426 = vpop.f32.mrf.mxu0
      %v427 = vadd.f32 0.0, %v426
      %428 = vmatmul.f32.gmra.mxu0 %v407
      %v429 = vpop.f32.mrf.mxu0
      %v430 = vadd.f32 0.0, %v429
      %431 = vdwg.mxu0
      %v432 = vadd.f32 %v357, %v427
      %v433 = vadd.f32 %v360, %v430
      %v434 = vld [vmem:[%s3] sm:$0x1]
      %v436 = vperm.slane %v434, 0
      %v438 = vadd.f32 %v432, %v436
      %v439 = vadd.f32 %v433, %v436
      %v440 = vld [vmem:[%s4] sm:$0xff]
      %v441 = vld [vmem:[%s4 + $0x8] sm:$0xff]
      %v442 = vld [vmem:[%s4 + $0x10] sm:$0xff]
      %v443 = vld [vmem:[%s4 + $0x18] sm:$0xff]
      %v445 = vsel %vm256, %v440, 0
      %v448 = vsel %vm256, %v441, 0
      %v451 = vsel %vm256, %v442, 0
      %v454 = vsel %vm256, %v443, 0
      %456 = vmatpush.msra.mxu0 0.0
      %457 = vmatpush.msra.mxu0 0.0
      %458 = vmatpush.msra.mxu0 0.0
      %459 = vmatpush.msra.mxu0 0.0
      %460 = vmatpush.msra.mxu0 0.0
      %461 = vmatpush.msra.mxu0 0.0
      %462 = vmatpush.msra.mxu0 0.0
      %463 = vmatpush.msra.mxu0 0.0
      %464 = vmatpush.msra.mxu0 0.0
      %465 = vmatpush.msra.mxu0 0.0
      %466 = vmatpush.msra.mxu0 0.0
      %467 = vmatpush.msra.mxu0 0.0
      %468 = vmatpush.msra.mxu0 0.0
      %469 = vmatpush.msra.mxu0 0.0
      %470 = vmatpush.msra.mxu0 %v439
      %471 = vmatpush.msra.mxu0 %v438
      %472 = vmatmul.f32.gmra.mxu0 %v445
      %v473 = vpop.f32.mrf.mxu0
      %v474 = vadd.f32 0.0, %v473
      %475 = vmatmul.f32.gmra.mxu0 %v448
      %v476 = vpop.f32.mrf.mxu0
      %v477 = vadd.f32 0.0, %v476
      %478 = vmatmul.f32.gmra.mxu0 %v451
      %v479 = vpop.f32.mrf.mxu0
      %v480 = vadd.f32 0.0, %v479
      %481 = vmatmul.f32.gmra.mxu0 %v454
      %v482 = vpop.f32.mrf.mxu0
      %v483 = vadd.f32 0.0, %v482
      %484 = vdwg.mxu0
      %v485 = vld [vmem:[%s5] sm:$0xff]
      %v486 = vld [vmem:[%s5 + $0x8] sm:$0xff]
      %v487 = vld [vmem:[%s5 + $0x10] sm:$0xff]
      %v488 = vld [vmem:[%s5 + $0x18] sm:$0xff]
      %v489 = vld [vmem:[%s5 + $0x20] sm:$0xff]
      %v490 = vld [vmem:[%s5 + $0x28] sm:$0xff]
      %v491 = vld [vmem:[%s5 + $0x30] sm:$0xff]
      %v492 = vld [vmem:[%s5 + $0x38] sm:$0xff]
      %v493 = vld [vmem:[%s5 + $0x40] sm:$0xff]
      %v494 = vld [vmem:[%s5 + $0x48] sm:$0xff]
      %v495 = vld [vmem:[%s5 + $0x50] sm:$0xff]
      %v496 = vld [vmem:[%s5 + $0x58] sm:$0xff]
      %v497 = vld [vmem:[%s5 + $0x60] sm:$0xff]
      %v498 = vld [vmem:[%s5 + $0x68] sm:$0xff]
      %v499 = vld [vmem:[%s5 + $0x70] sm:$0xff]
      %v500 = vld [vmem:[%s5 + $0x78] sm:$0xff]
      %v501 = vld [vmem:[%s5 + $0x80] sm:$0xff]
      %v502 = vld [vmem:[%s5 + $0x88] sm:$0xff]
      %v503 = vld [vmem:[%s5 + $0x90] sm:$0xff]
      %v504 = vld [vmem:[%s5 + $0x98] sm:$0xff]
      %v505 = vld [vmem:[%s5 + $0xa0] sm:$0xff]
      %v506 = vld [vmem:[%s5 + $0xa8] sm:$0xff]
      %v507 = vld [vmem:[%s5 + $0xb0] sm:$0xff]
      %v508 = vld [vmem:[%s5 + $0xb8] sm:$0xff]
      %v509 = vld [vmem:[%s5 + $0xc0] sm:$0xff]
      %v510 = vld [vmem:[%s5 + $0xc8] sm:$0xff]
      %v511 = vld [vmem:[%s5 + $0xd0] sm:$0xff]
      %v512 = vld [vmem:[%s5 + $0xd8] sm:$0xff]
      %v513 = vld [vmem:[%s5 + $0xe0] sm:$0xff]
      %v514 = vld [vmem:[%s5 + $0xe8] sm:$0xff]
      %v515 = vld [vmem:[%s5 + $0xf0] sm:$0xff]
      %v516 = vld [vmem:[%s5 + $0xf8] sm:$0xff]
      %517 = vmatpush.msra.mxu0 %v515
      %518 = vmatpush.msra.mxu0 %v513
      %519 = vmatpush.msra.mxu0 %v511
      %520 = vmatpush.msra.mxu0 %v509
      %521 = vmatpush.msra.mxu0 %v507
      %522 = vmatpush.msra.mxu0 %v505
      %523 = vmatpush.msra.mxu0 %v503
      %524 = vmatpush.msra.mxu0 %v501
      %525 = vmatpush.msra.mxu0 %v499
      %526 = vmatpush.msra.mxu0 %v497
      %527 = vmatpush.msra.mxu0 %v495
      %528 = vmatpush.msra.mxu0 %v493
      %529 = vmatpush.msra.mxu0 %v491
      %530 = vmatpush.msra.mxu0 %v489
      %531 = vmatpush.msra.mxu0 %v487
      %532 = vmatpush.msra.mxu0 %v485
      %533 = vmatmul.f32.gmra.mxu0 %v474
      %v534 = vpop.f32.mrf.mxu0
      %v535 = vadd.f32 0.0, %v534
      %536 = vmatmul.f32.gmra.mxu0 %v477
      %v537 = vpop.f32.mrf.mxu0
      %v538 = vadd.f32 0.0, %v537
      %539 = vmatmul.f32.gmra.mxu0 %v480
      %v540 = vpop.f32.mrf.mxu0
      %v541 = vadd.f32 0.0, %v540
      %542 = vmatmul.f32.gmra.mxu0 %v483
      %v543 = vpop.f32.mrf.mxu0
      %v544 = vadd.f32 0.0, %v543
      %545 = vdwg.mxu0
      %546 = vmatpush.msra.mxu0 %v516
      %547 = vmatpush.msra.mxu0 %v514
      %548 = vmatpush.msra.mxu0 %v512
      %549 = vmatpush.msra.mxu0 %v510
      %550 = vmatpush.msra.mxu0 %v508
      %551 = vmatpush.msra.mxu0 %v506
      %552 = vmatpush.msra.mxu0 %v504
      %553 = vmatpush.msra.mxu0 %v502
      %554 = vmatpush.msra.mxu0 %v500
      %555 = vmatpush.msra.mxu0 %v498
      %556 = vmatpush.msra.mxu0 %v496
      %557 = vmatpush.msra.mxu0 %v494
      %558 = vmatpush.msra.mxu0 %v492
      %559 = vmatpush.msra.mxu0 %v490
      %560 = vmatpush.msra.mxu0 %v488
      %561 = vmatpush.msra.mxu0 %v486
      %562 = vmatmul.f32.gmra.mxu0 %v474
      %v563 = vpop.f32.mrf.mxu0
      %v564 = vadd.f32 0.0, %v563
      %565 = vmatmul.f32.gmra.mxu0 %v477
      %v566 = vpop.f32.mrf.mxu0
      %v567 = vadd.f32 0.0, %v566
      %568 = vmatmul.f32.gmra.mxu0 %v480
      %v569 = vpop.f32.mrf.mxu0
      %v570 = vadd.f32 0.0, %v569
      %571 = vmatmul.f32.gmra.mxu0 %v483
      %v572 = vpop.f32.mrf.mxu0
      %v573 = vadd.f32 0.0, %v572
      %574 = vdwg.mxu0
      %575 = vst [vmem:[%s251] sm:$0xff] %v535
      %576 = vst [vmem:[%s251 + $0x8] sm:$0xff] %v564
      %577 = vst [vmem:[%s251 + $0x10] sm:$0xff] %v538
      %578 = vst [vmem:[%s251 + $0x18] sm:$0xff] %v567
      %579 = vst [vmem:[%s251 + $0x20] sm:$0xff] %v541
      %580 = vst [vmem:[%s251 + $0x28] sm:$0xff] %v570
      %581 = vst [vmem:[%s251 + $0x30] sm:$0xff] %v544
      %582 = vst [vmem:[%s251 + $0x38] sm:$0xff] %v573
      %p583 = scmp.lt.s32.totalorder %s17, 1
      %s584 = scalar_select %p583, %s17, 1
      %s585 = smul.addr %s584, 8
      %s586 = smul.addr %s585, 8
      %s587 = scalar_lea.vmem %s6, %s586
      // Predicated region
      $region45: #{updownsample_forward.1} parent=43 // pred_check
        %p588 = pneg %p166
      $region46: #{updownsample_forward.1} parent=43 // pred_check_branch
        %590 = sbr.rel (%p588) target = $region48
      $region47: #{updownsample_forward.1} parent=43 // pred_region
        _
      $region48: #{updownsample_forward.1} parent=43 // pred_fallthru
        _
    $region44: #{updownsample_forward.1} parent=5 // pred_fallthru
      _
    %p591 = scmp.le.s32.totalorder 2, %s12
    // Predicated region
    $region49: #{updownsample_forward.1} parent=5 // pred_check
      %p592 = pneg %p591
    $region50: #{updownsample_forward.1} parent=5 // pred_check_branch
      %594 = sbr.rel (%p592) target = $region52
    $region51: #{updownsample_forward.1} parent=5 // pred_region
      %s595 = ssub.s32 %s12, 2
      // Predicated region
      $region53: #{updownsample_forward.1} parent=51 // pred_check
        %p596 = pneg %p172
      $region54: #{updownsample_forward.1} parent=51 // pred_check_branch
        %598 = sbr.rel (%p596) target = $region56
      $region55: #{updownsample_forward.1} parent=51 // pred_region
        %p599 = scmp.lt.s32.totalorder %s18, 1
        %s600 = scalar_select %p599, %s18, 1
        %s601 = smul.addr %s600, 8
        %s602 = smul.addr %s601, 8
        %s603 = scalar_lea.vmem %s6, %s602
      $region56: #{updownsample_forward.1} parent=51 // pred_fallthru
        _
    $region52: #{updownsample_forward.1} parent=5 // pred_fallthru
      _
  $region6: #{updownsample_forward.1} parent=0 // loop_footer
    %s16 = sadd.s32 1, %s12
  $region7: #{updownsample_forward.1} parent=0 // loop_footer_branch
    %11 = sbr.rel target = $region3
  $region8: #{updownsample_forward.1} parent=0 // loop_exit
    _

</llo_original>
